<compile_context>
chip_gen: v6e
topology: v6e:2x2x1
jax: 0.10.0
libtpu: 0.0.40
codegen_flags: <defaults>
</compile_context>

<pallas_src>
import functools

import jax
import jax.numpy as jnp
from jax.experimental import pallas as pl
from jax.experimental.pallas import tpu as pltpu

# 3x3 depthwise-conv tap offsets, row-major over (ky, kx) = (dy+1, dx+1) --
# the same ordering used for the (2C, 9) reshaped weights.
_TAPS = tuple((dy, dx) for dy in (-1, 0, 1) for dx in (-1, 0, 1))


def _choose_nb(n, c, hw, itemsize, budget_bytes=24 << 20):
    """Images per grid step: as many as fit the VMEM budget while (when
    possible) keeping >= 2 grid steps so both v7x TensorCores get work."""
    per_img = 2 * 2 * c * hw * itemsize          # double-buffered in + out tile
    live = 12 * (2 * c) * hw * 4                 # live f32 temporaries in flight
    cap = max(1, (budget_bytes - live) // max(per_img, 1))
    best = 1
    for nb in range(1, n + 1):
        if n % nb:
            continue
        if nb > cap:
            break
        if n // nb >= 2 or n == 1:
            best = nb
    return best


def _pam_kernel(x_ref, gamma_ref, beta_ref, w1_ref, b1_ref, dw_ref, b2_ref,
                wsca_ref, bsca_ref, lr_ref, o_ref, *, C, H, W, eps, nb):
    f32 = jnp.float32
    HW = H * W
    Ch = C // 2

    # ---- per-step constants: params + tap boundary masks (hoisted out of the
    #      per-image loop; JAX does not CSE broadcasts) ----
    gamma = gamma_ref[...].astype(f32)           # (C, 1)
    beta = beta_ref[...].astype(f32)             # (C, 1)
    w1 = w1_ref[...].astype(f32)                 # (2C, C)
    b1 = b1_ref[...].astype(f32)                 # (2C, 1)
    dw = dw_ref[...].astype(f32)                 # (2C, 9)
    b2 = b2_ref[...].astype(f32)                 # (2C, 1)
    wsca = wsca_ref[...].astype(f32)             # (C, C) block-diagonal
    bsca = bsca_ref[...].astype(f32)             # (C, 1)

    idx = jax.lax.broadcasted_iota(jnp.int32, (1, HW), 1)
    up = (idx >= W).astype(f32)                  # row-1 in bounds
    down = (idx < (H - 1) * W).astype(f32)       # row+1 in bounds
    left = lr_ref[0:1, :].astype(f32)            # col-1 in bounds
    right = lr_ref[1:2, :].astype(f32)           # col+1 in bounds
    tap_mask = {(-1, -1): up * left, (-1, 0): up, (-1, 1): up * right,
                (0, -1): left, (0, 1): right,
                (1, -1): down * left, (1, 0): down, (1, 1): down * right}

    for b in range(nb):                          # static unroll over images
        x = x_ref[b].astype(f32)                 # (C, HW)

        # ---- LayerNorm2d over channels (two-pass stats, matches reference) ----
        mu = jnp.sum(x, axis=0, keepdims=True) * (1.0 / C)       # (1, HW)
        xc = x - mu
        var = jnp.sum(xc * xc, axis=0, keepdims=True) * (1.0 / C)
        y = xc * jax.lax.rsqrt(var + eps)
        y = y * gamma + beta                                     # (C, HW)

        # ---- conv1: 1x1, C -> 2C (channel matmul, spatial on lanes) ----
        m = jnp.dot(w1, y, preferred_element_type=f32) + b1      # (2C, HW)

        # ---- conv2: 3x3 depthwise, padding=1, via lane rolls + edge masks ----
        acc = dw[:, 4:5] * m                     # center tap: no roll, no mask
        for k, (dy, dx) in enumerate(_TAPS):
            if dy == 0 and dx == 0:
                continue
            s = dy * W + dx                      # flat tap offset
            # win[i] = m[(i + s) mod HW]; mask zeroes every wrapped /
            # out-of-row position, reproducing the conv's zero padding.
            win = pltpu.roll(m, (-s) % HW, axis=1)
            acc = acc + dw[:, k:k + 1] * (win * tap_mask[(dy, dx)])
        m2 = acc + b2                                            # (2C, HW)

        # ---- ParallelSelfActivation: chunk over channels, multiply ----
        p = m2[:C, :] * m2[C:, :]                                # (C, HW)

        # ---- SCA: avg pool (rows < C/2) / max pool (rest) + fused 1x1 ----
        avg_all = jnp.sum(p, axis=1, keepdims=True) * (1.0 / HW) # (C, 1)
        max_all = jnp.max(p, axis=1, keepdims=True)              # (C, 1)
        rows = jax.lax.broadcasted_iota(jnp.int32, (C, 1), 0)
        pooled = jnp.where(rows < Ch, avg_all, max_all)          # (C, 1)
        pooled_b = jnp.broadcast_to(pooled, (C, 128))            # one vreg wide
        scale = jnp.dot(wsca, pooled_b,
                        preferred_element_type=f32)[:, 0:1] + bsca   # (C, 1)

        # dropout1 is Identity (drop_out_rate == 0.0)
        o_ref[b] = (scale * p).astype(o_ref.dtype)


def position_attention_module(x, params, *, eps=1e-6):
    """x: (N, C, H, W) NCHW. Returns (N, C, H, W)."""
    gamma, beta, w1, b1, dw, b2, wA, bA, wM, bM = params
    N, C, H, W = x.shape
    assert C % 2 == 0, "channel count must be even (PSA + SCA chunking)"
    C2, Ch, HW = 2 * C, C // 2, H * W

    # Host-side parameter plumbing (tiny, one-time): per-channel vectors as
    # (rows, 1) columns, depthwise weights flattened to (2C, 9), both SCA 1x1
    # convs fused into one block-diagonal (C, C) weight.
    gamma_c = gamma.reshape(C, 1)
    beta_c = beta.reshape(C, 1)
    b1_c = b1.reshape(C2, 1)
    dw_c = dw.reshape(C2, 9)
    b2_c = b2.reshape(C2, 1)
    wsca = (jnp.zeros((C, C), w1.dtype)
            .at[:Ch, :Ch].set(wA)
            .at[Ch:, Ch:].set(wM))
    bsca = jnp.concatenate([bA, bM], axis=0).reshape(C, 1)

    # Column-edge validity masks (left/right neighbour in bounds); row-edge
    # masks are generated in-kernel from a lane iota.
    col = jnp.tile(jnp.arange(W, dtype=jnp.int32), H)
    lr = jnp.stack([col >= 1, col < W - 1], axis=0).astype(jnp.float32)  # (2, HW)

    # Free reshape (no transpose): spatial goes onto the lane axis.
    x_flat = x.reshape(N, C, HW)

    nb = _choose_nb(N, C, HW, x.dtype.itemsize)
    grid = (N // nb,)

    # Explicit VMEM budget (covers v7x's smaller 64 MiB VMEM).
    io_bytes = 2 * 2 * nb * C * HW * x.dtype.itemsize
    tmp_bytes = 12 * C2 * HW * 4
    vmem_limit = int(min(max(2 * (io_bytes + tmp_bytes) + (1 << 20), 32 << 20),
                         48 << 20))

    kernel = functools.partial(_pam_kernel, C=C, H=H, W=W, eps=eps, nb=nb)
    out_flat = pl.pallas_call(
        kernel,
        out_shape=jax.ShapeDtypeStruct((N, C, HW), x.dtype),
        grid_spec=pltpu.PrefetchScalarGridSpec(
            num_scalar_prefetch=0,
            grid=grid,
            in_specs=[
                pl.BlockSpec((nb, C, HW), lambda n: (n, 0, 0)),  # x (nb images)
                pl.BlockSpec((C, 1), lambda n: (0, 0)),          # LN gamma
                pl.BlockSpec((C, 1), lambda n: (0, 0)),          # LN beta
                pl.BlockSpec((C2, C), lambda n: (0, 0)),         # conv1 weight (2C, C)
                pl.BlockSpec((C2, 1), lambda n: (0, 0)),         # conv1 bias
                pl.BlockSpec((C2, 9), lambda n: (0, 0)),         # depthwise 3x3 weights
                pl.BlockSpec((C2, 1), lambda n: (0, 0)),         # conv2 bias
                pl.BlockSpec((C, C), lambda n: (0, 0)),          # fused SCA weight
                pl.BlockSpec((C, 1), lambda n: (0, 0)),          # fused SCA bias
                pl.BlockSpec((2, HW), lambda n: (0, 0)),         # left/right edge masks
            ],
            out_specs=pl.BlockSpec((nb, C, HW), lambda n: (n, 0, 0)),
        ),
        compiler_params=pltpu.CompilerParams(
            dimension_semantics=("parallel",),
            vmem_limit_bytes=vmem_limit),
    )(x_flat, gamma_c, beta_c, w1, b1_c, dw_c, b2_c, wsca, bsca, lr)

    return out_flat.reshape(N, C, H, W)


def _reference(x, params, *, eps=1e-6):
    """Pure-JAX reference mirroring the PyTorch forward (NCHW)."""
    gamma, beta, w1, b1, dw, b2, wA, bA, wM, bM = params
    N, C, H, W = x.shape
    Ch = C // 2
    xf = x.astype(jnp.float32)

    mu = xf.mean(axis=1, keepdims=True)
    var = ((xf - mu) ** 2).mean(axis=1, keepdims=True)
    y = (xf - mu) / jnp.sqrt(var + eps)
    y = gamma[None, :, None, None] * y + beta[None, :, None, None]

    m = jnp.einsum('oc,nchw->nohw', w1, y,
                   precision='highest') + b1[None, :, None, None]

    mp = jnp.pad(m, ((0, 0), (0, 0), (1, 1), (1, 1)))
    conv = jnp.zeros_like(m)
    for ky in range(3):
        for kx in range(3):
            conv = conv + dw[None, :, ky, kx, None, None] * mp[:, :, ky:ky + H, kx:kx + W]
    m2 = conv + b2[None, :, None, None]

    p = m2[:, :C] * m2[:, C:]
    p_avg, p_max = p[:, :Ch], p[:, Ch:]
    s_avg = jnp.einsum('oc,nc->no', wA, p_avg.mean(axis=(2, 3)),
                       precision='highest') + bA[None, :]
    s_max = jnp.einsum('oc,nc->no', wM, p_max.max(axis=(2, 3)),
                       precision='highest') + bM[None, :]
    out = jnp.concatenate([s_avg[:, :, None, None] * p_avg,
                           s_max[:, :, None, None] * p_max], axis=1)
    return out.astype(x.dtype)


def init_params(key, c, dtype=jnp.float32):
    """Deterministic synthetic parameters. Conv weights stored as (C_out, C_in[, kh, kw])."""
    ks = jax.random.split(key, 10)
    c2, ch = 2 * c, c // 2
    gamma = 1.0 + 0.1 * jax.random.normal(ks[0], (c,), dtype)    # LayerNorm2d weight
    beta = 0.1 * jax.random.normal(ks[1], (c,), dtype)           # LayerNorm2d bias
    w1 = 0.2 * jax.random.normal(ks[2], (c2, c), dtype)          # conv1 (1x1): (2C, C)
    b1 = 0.1 * jax.random.normal(ks[3], (c2,), dtype)
    dw = 0.2 * jax.random.normal(ks[4], (c2, 3, 3), dtype)       # conv2 depthwise 3x3
    b2 = 0.1 * jax.random.normal(ks[5], (c2,), dtype)
    wA = 0.2 * jax.random.normal(ks[6], (ch, ch), dtype)         # sca_avg 1x1 conv
    bA = 0.1 * jax.random.normal(ks[7], (ch,), dtype)
    wM = 0.2 * jax.random.normal(ks[8], (ch, ch), dtype)         # sca_max 1x1 conv
    bM = 0.1 * jax.random.normal(ks[9], (ch,), dtype)
    return (gamma, beta, w1, b1, dw, b2, wA, bA, wM, bM)


if __name__ == "__main__":
    key = jax.random.PRNGKey(0)
    kx, kp = jax.random.split(key)

    N, C, H, W = 2, 8, 16, 16
    x = jax.random.normal(kx, (N, C, H, W), jnp.float32)
    params = init_params(kp, C)

    out = position_attention_module(x, params)
    out = jax.block_until_ready(out)

    ref = _reference(x, params)
    assert out.shape == (N, C, H, W)
    max_err = float(jnp.max(jnp.abs(out - ref)))
    # Tolerance leaves room for MXU f32 multi-pass vs XLA dot differences.
    assert jnp.allclose(out, ref, atol=5e-3, rtol=5e-3), \
        f"mismatch vs reference (max abs err {max_err})"

    print("KERNEL_OK")
</pallas_src>

<mosaic_0001>
module attributes {stable_mosaic.version = 11 : i64} {
  func.func @_pam_kernel(%arg0: i32, %arg1: memref<1x8x256xf32, #tpu.memory_space<vmem>>, %arg2: memref<8x1xf32, #tpu.memory_space<vmem>>, %arg3: memref<8x1xf32, #tpu.memory_space<vmem>>, %arg4: memref<16x8xf32, #tpu.memory_space<vmem>>, %arg5: memref<16x1xf32, #tpu.memory_space<vmem>>, %arg6: memref<16x9xf32, #tpu.memory_space<vmem>>, %arg7: memref<16x1xf32, #tpu.memory_space<vmem>>, %arg8: memref<8x8xf32, #tpu.memory_space<vmem>>, %arg9: memref<8x1xf32, #tpu.memory_space<vmem>>, %arg10: memref<2x256xf32, #tpu.memory_space<vmem>>, %arg11: memref<1x8x256xf32, #tpu.memory_space<vmem>>) attributes {dimension_semantics = [#tpu.dimension_semantics<parallel>], iteration_bounds = array<i64: 2>, scalar_prefetch = 0 : i64, scratch_operands = 0 : i64, tpu.core_type = #tpu.core_type<tc>, window_params = [{transform_indices = @transform_0, window_bounds = array<i64: 1, 8, 256>}, {pipeline_mode = #tpu.pipeline_mode<synchronous>, transform_indices = @transform_1, window_bounds = array<i64: 8, 1>}, {pipeline_mode = #tpu.pipeline_mode<synchronous>, transform_indices = @transform_2, window_bounds = array<i64: 8, 1>}, {pipeline_mode = #tpu.pipeline_mode<synchronous>, transform_indices = @transform_3, window_bounds = array<i64: 16, 8>}, {pipeline_mode = #tpu.pipeline_mode<synchronous>, transform_indices = @transform_4, window_bounds = array<i64: 16, 1>}, {pipeline_mode = #tpu.pipeline_mode<synchronous>, transform_indices = @transform_5, window_bounds = array<i64: 16, 9>}, {pipeline_mode = #tpu.pipeline_mode<synchronous>, transform_indices = @transform_6, window_bounds = array<i64: 16, 1>}, {pipeline_mode = #tpu.pipeline_mode<synchronous>, transform_indices = @transform_7, window_bounds = array<i64: 8, 8>}, {pipeline_mode = #tpu.pipeline_mode<synchronous>, transform_indices = @transform_8, window_bounds = array<i64: 8, 1>}, {pipeline_mode = #tpu.pipeline_mode<synchronous>, transform_indices = @transform_9, window_bounds = array<i64: 2, 256>}, {transform_indices = @transform_10, window_bounds = array<i64: 1, 8, 256>}]} {
    %c0 = arith.constant 0 : index
    %c0_0 = arith.constant 0 : index
    %0 = vector.load %arg2[%c0, %c0_0] : memref<8x1xf32, #tpu.memory_space<vmem>>, vector<8x1xf32>
    %c0_1 = arith.constant 0 : index
    %c0_2 = arith.constant 0 : index
    %1 = vector.load %arg3[%c0_1, %c0_2] : memref<8x1xf32, #tpu.memory_space<vmem>>, vector<8x1xf32>
    %c0_3 = arith.constant 0 : index
    %c0_4 = arith.constant 0 : index
    %2 = vector.load %arg4[%c0_3, %c0_4] : memref<16x8xf32, #tpu.memory_space<vmem>>, vector<16x8xf32>
    %c0_5 = arith.constant 0 : index
    %c0_6 = arith.constant 0 : index
    %3 = vector.load %arg5[%c0_5, %c0_6] : memref<16x1xf32, #tpu.memory_space<vmem>>, vector<16x1xf32>
    %c0_7 = arith.constant 0 : index
    %c0_8 = arith.constant 0 : index
    %4 = vector.load %arg6[%c0_7, %c0_8] : memref<16x9xf32, #tpu.memory_space<vmem>>, vector<16x9xf32>
    %c0_9 = arith.constant 0 : index
    %c0_10 = arith.constant 0 : index
    %5 = vector.load %arg7[%c0_9, %c0_10] : memref<16x1xf32, #tpu.memory_space<vmem>>, vector<16x1xf32>
    %c0_11 = arith.constant 0 : index
    %c0_12 = arith.constant 0 : index
    %6 = vector.load %arg8[%c0_11, %c0_12] : memref<8x8xf32, #tpu.memory_space<vmem>>, vector<8x8xf32>
    %c0_13 = arith.constant 0 : index
    %c0_14 = arith.constant 0 : index
    %7 = vector.load %arg9[%c0_13, %c0_14] : memref<8x1xf32, #tpu.memory_space<vmem>>, vector<8x1xf32>
    %8 = tpu.iota {dimensions = array<i32: 1>} : vector<1x256xi32>
    %c16_i32 = arith.constant 16 : i32
    %9 = vector.broadcast %c16_i32 : i32 to vector<1x256xi32>
    %10 = arith.cmpi sge, %8, %9 : vector<1x256xi32>
    %11 = arith.extui %10 : vector<1x256xi1> to vector<1x256xi32>
    %12 = arith.sitofp %11 : vector<1x256xi32> to vector<1x256xf32>
    %c240_i32 = arith.constant 240 : i32
    %13 = vector.broadcast %c240_i32 : i32 to vector<1x256xi32>
    %14 = arith.cmpi slt, %8, %13 : vector<1x256xi32>
    %15 = arith.extui %14 : vector<1x256xi1> to vector<1x256xi32>
    %16 = arith.sitofp %15 : vector<1x256xi32> to vector<1x256xf32>
    %c0_15 = arith.constant 0 : index
    %c0_16 = arith.constant 0 : index
    %17 = vector.load %arg10[%c0_15, %c0_16] : memref<2x256xf32, #tpu.memory_space<vmem>>, vector<1x256xf32>
    %c1 = arith.constant 1 : index
    %c0_17 = arith.constant 0 : index
    %18 = vector.load %arg10[%c1, %c0_17] : memref<2x256xf32, #tpu.memory_space<vmem>>, vector<1x256xf32>
    %19 = arith.mulf %12, %17 : vector<1x256xf32>
    %20 = arith.mulf %12, %18 : vector<1x256xf32>
    %21 = arith.mulf %16, %17 : vector<1x256xf32>
    %22 = arith.mulf %16, %18 : vector<1x256xf32>
    %c0_18 = arith.constant 0 : index
    %c0_19 = arith.constant 0 : index
    %c0_20 = arith.constant 0 : index
    %23 = vector.load %arg1[%c0_18, %c0_19, %c0_20] : memref<1x8x256xf32, #tpu.memory_space<vmem>>, vector<1x8x256xf32>
    %24 = vector.shape_cast %23 : vector<1x8x256xf32> to vector<8x256xf32>
    %cst = arith.constant dense<0.000000e+00> : vector<256xf32>
    %25 = vector.multi_reduction <add>, %24, %cst [0] : vector<8x256xf32> to vector<256xf32>
    %26 = vector.shape_cast %25 : vector<256xf32> to vector<1x256xf32>
    %cst_21 = arith.constant 1.250000e-01 : f32
    %27 = vector.broadcast %cst_21 : f32 to vector<1x256xf32>
    %28 = arith.mulf %26, %27 : vector<1x256xf32>
    %29 = vector.broadcast %28 : vector<1x256xf32> to vector<8x256xf32>
    %30 = arith.subf %24, %29 : vector<8x256xf32>
    %31 = arith.mulf %30, %30 : vector<8x256xf32>
    %cst_22 = arith.constant dense<0.000000e+00> : vector<256xf32>
    %32 = vector.multi_reduction <add>, %31, %cst_22 [0] : vector<8x256xf32> to vector<256xf32>
    %33 = vector.shape_cast %32 : vector<256xf32> to vector<1x256xf32>
    %cst_23 = arith.constant 1.250000e-01 : f32
    %34 = vector.broadcast %cst_23 : f32 to vector<1x256xf32>
    %35 = arith.mulf %33, %34 : vector<1x256xf32>
    %cst_24 = arith.constant 9.99999997E-7 : f32
    %36 = vector.broadcast %cst_24 : f32 to vector<1x256xf32>
    %37 = arith.addf %35, %36 : vector<1x256xf32>
    %38 = math.rsqrt %37 : vector<1x256xf32>
    %39 = vector.broadcast %38 : vector<1x256xf32> to vector<8x256xf32>
    %40 = arith.mulf %30, %39 : vector<8x256xf32>
    %41 = vector.broadcast %0 : vector<8x1xf32> to vector<8x256xf32>
    %42 = arith.mulf %40, %41 : vector<8x256xf32>
    %43 = vector.broadcast %1 : vector<8x1xf32> to vector<8x256xf32>
    %44 = arith.addf %42, %43 : vector<8x256xf32>
    %cst_25 = arith.constant dense<0.000000e+00> : vector<16x256xf32>
    %45 = tpu.matmul %2, %44, %cst_25 {dimension_numbers = #tpu.dot_dimension_numbers<[1], [0], [0], [1], [0, 0, 1, 1], [], []>} : vector<16x8xf32>, vector<8x256xf32>, vector<16x256xf32> -> vector<16x256xf32>
    %46 = vector.broadcast %3 : vector<16x1xf32> to vector<16x256xf32>
    %47 = arith.addf %45, %46 : vector<16x256xf32>
    %48 = vector.extract_strided_slice %4 {offsets = [0, 4], sizes = [16, 1], strides = [1, 1]} : vector<16x9xf32> to vector<16x1xf32>
    %49 = vector.broadcast %48 : vector<16x1xf32> to vector<16x256xf32>
    %50 = arith.mulf %49, %47 : vector<16x256xf32>
    %c17_i32 = arith.constant 17 : i32
    %51 = tpu.dynamic_rotate %47 by %c17_i32 dim 1 : vector<16x256xf32>, i32 -> vector<16x256xf32>
    %52 = vector.extract_strided_slice %4 {offsets = [0, 0], sizes = [16, 1], strides = [1, 1]} : vector<16x9xf32> to vector<16x1xf32>
    %53 = vector.broadcast %19 : vector<1x256xf32> to vector<16x256xf32>
    %54 = arith.mulf %51, %53 : vector<16x256xf32>
    %55 = vector.broadcast %52 : vector<16x1xf32> to vector<16x256xf32>
    %56 = arith.mulf %55, %54 : vector<16x256xf32>
    %57 = arith.addf %50, %56 : vector<16x256xf32>
    %c16_i32_26 = arith.constant 16 : i32
    %58 = tpu.dynamic_rotate %47 by %c16_i32_26 dim 1 : vector<16x256xf32>, i32 -> vector<16x256xf32>
    %59 = vector.extract_strided_slice %4 {offsets = [0, 1], sizes = [16, 1], strides = [1, 1]} : vector<16x9xf32> to vector<16x1xf32>
    %60 = vector.broadcast %12 : vector<1x256xf32> to vector<16x256xf32>
    %61 = arith.mulf %58, %60 : vector<16x256xf32>
    %62 = vector.broadcast %59 : vector<16x1xf32> to vector<16x256xf32>
    %63 = arith.mulf %62, %61 : vector<16x256xf32>
    %64 = arith.addf %57, %63 : vector<16x256xf32>
    %c15_i32 = arith.constant 15 : i32
    %65 = tpu.dynamic_rotate %47 by %c15_i32 dim 1 : vector<16x256xf32>, i32 -> vector<16x256xf32>
    %66 = vector.extract_strided_slice %4 {offsets = [0, 2], sizes = [16, 1], strides = [1, 1]} : vector<16x9xf32> to vector<16x1xf32>
    %67 = vector.broadcast %20 : vector<1x256xf32> to vector<16x256xf32>
    %68 = arith.mulf %65, %67 : vector<16x256xf32>
    %69 = vector.broadcast %66 : vector<16x1xf32> to vector<16x256xf32>
    %70 = arith.mulf %69, %68 : vector<16x256xf32>
    %71 = arith.addf %64, %70 : vector<16x256xf32>
    %c1_i32 = arith.constant 1 : i32
    %72 = tpu.dynamic_rotate %47 by %c1_i32 dim 1 : vector<16x256xf32>, i32 -> vector<16x256xf32>
    %73 = vector.extract_strided_slice %4 {offsets = [0, 3], sizes = [16, 1], strides = [1, 1]} : vector<16x9xf32> to vector<16x1xf32>
    %74 = vector.broadcast %17 : vector<1x256xf32> to vector<16x256xf32>
    %75 = arith.mulf %72, %74 : vector<16x256xf32>
    %76 = vector.broadcast %73 : vector<16x1xf32> to vector<16x256xf32>
    %77 = arith.mulf %76, %75 : vector<16x256xf32>
    %78 = arith.addf %71, %77 : vector<16x256xf32>
    %c255_i32 = arith.constant 255 : i32
    %79 = tpu.dynamic_rotate %47 by %c255_i32 dim 1 : vector<16x256xf32>, i32 -> vector<16x256xf32>
    %80 = vector.extract_strided_slice %4 {offsets = [0, 5], sizes = [16, 1], strides = [1, 1]} : vector<16x9xf32> to vector<16x1xf32>
    %81 = vector.broadcast %18 : vector<1x256xf32> to vector<16x256xf32>
    %82 = arith.mulf %79, %81 : vector<16x256xf32>
    %83 = vector.broadcast %80 : vector<16x1xf32> to vector<16x256xf32>
    %84 = arith.mulf %83, %82 : vector<16x256xf32>
    %85 = arith.addf %78, %84 : vector<16x256xf32>
    %c241_i32 = arith.constant 241 : i32
    %86 = tpu.dynamic_rotate %47 by %c241_i32 dim 1 : vector<16x256xf32>, i32 -> vector<16x256xf32>
    %87 = vector.extract_strided_slice %4 {offsets = [0, 6], sizes = [16, 1], strides = [1, 1]} : vector<16x9xf32> to vector<16x1xf32>
    %88 = vector.broadcast %21 : vector<1x256xf32> to vector<16x256xf32>
    %89 = arith.mulf %86, %88 : vector<16x256xf32>
    %90 = vector.broadcast %87 : vector<16x1xf32> to vector<16x256xf32>
    %91 = arith.mulf %90, %89 : vector<16x256xf32>
    %92 = arith.addf %85, %91 : vector<16x256xf32>
    %c240_i32_27 = arith.constant 240 : i32
    %93 = tpu.dynamic_rotate %47 by %c240_i32_27 dim 1 : vector<16x256xf32>, i32 -> vector<16x256xf32>
    %94 = vector.extract_strided_slice %4 {offsets = [0, 7], sizes = [16, 1], strides = [1, 1]} : vector<16x9xf32> to vector<16x1xf32>
    %95 = vector.broadcast %16 : vector<1x256xf32> to vector<16x256xf32>
    %96 = arith.mulf %93, %95 : vector<16x256xf32>
    %97 = vector.broadcast %94 : vector<16x1xf32> to vector<16x256xf32>
    %98 = arith.mulf %97, %96 : vector<16x256xf32>
    %99 = arith.addf %92, %98 : vector<16x256xf32>
    %c239_i32 = arith.constant 239 : i32
    %100 = tpu.dynamic_rotate %47 by %c239_i32 dim 1 : vector<16x256xf32>, i32 -> vector<16x256xf32>
    %101 = vector.extract_strided_slice %4 {offsets = [0, 8], sizes = [16, 1], strides = [1, 1]} : vector<16x9xf32> to vector<16x1xf32>
    %102 = vector.broadcast %22 : vector<1x256xf32> to vector<16x256xf32>
    %103 = arith.mulf %100, %102 : vector<16x256xf32>
    %104 = vector.broadcast %101 : vector<16x1xf32> to vector<16x256xf32>
    %105 = arith.mulf %104, %103 : vector<16x256xf32>
    %106 = arith.addf %99, %105 : vector<16x256xf32>
    %107 = vector.broadcast %5 : vector<16x1xf32> to vector<16x256xf32>
    %108 = arith.addf %106, %107 : vector<16x256xf32>
    %109 = vector.extract_strided_slice %108 {offsets = [0, 0], sizes = [8, 256], strides = [1, 1]} : vector<16x256xf32> to vector<8x256xf32>
    %110 = vector.extract_strided_slice %108 {offsets = [8, 0], sizes = [8, 256], strides = [1, 1]} : vector<16x256xf32> to vector<8x256xf32>
    %111 = arith.mulf %109, %110 : vector<8x256xf32>
    %cst_28 = arith.constant dense<0.000000e+00> : vector<8xf32>
    %112 = vector.multi_reduction <add>, %111, %cst_28 [1] : vector<8x256xf32> to vector<8xf32>
    %113 = vector.shape_cast %112 : vector<8xf32> to vector<8x1xf32>
    %cst_29 = arith.constant 3.906250e-03 : f32
    %114 = vector.broadcast %cst_29 : f32 to vector<8x1xf32>
    %115 = arith.mulf %113, %114 : vector<8x1xf32>
    %cst_30 = arith.constant dense<0xFF800000> : vector<8xf32>
    %116 = vector.multi_reduction <maximumf>, %111, %cst_30 [1] : vector<8x256xf32> to vector<8xf32>
    %117 = vector.shape_cast %116 : vector<8xf32> to vector<8x1xf32>
    %118 = tpu.iota {dimensions = array<i32: 0>} : vector<8x1xi32>
    %c4_i32 = arith.constant 4 : i32
    %119 = vector.broadcast %c4_i32 : i32 to vector<8x1xi32>
    %120 = arith.cmpi slt, %118, %119 : vector<8x1xi32>
    %121 = arith.select %120, %115, %117 : vector<8x1xi1>, vector<8x1xf32>
    %122 = vector.shape_cast %121 : vector<8x1xf32> to vector<8x1xf32>
    %123 = vector.broadcast %122 : vector<8x1xf32> to vector<8x128xf32>
    %cst_31 = arith.constant dense<0.000000e+00> : vector<8x128xf32>
    %124 = tpu.matmul %6, %123, %cst_31 {dimension_numbers = #tpu.dot_dimension_numbers<[1], [0], [0], [1], [0, 0, 1, 1], [], []>} : vector<8x8xf32>, vector<8x128xf32>, vector<8x128xf32> -> vector<8x128xf32>
    %125 = vector.extract_strided_slice %124 {offsets = [0, 0], sizes = [8, 1], strides = [1, 1]} : vector<8x128xf32> to vector<8x1xf32>
    %126 = arith.addf %125, %7 : vector<8x1xf32>
    %127 = vector.broadcast %126 : vector<8x1xf32> to vector<8x256xf32>
    %128 = arith.mulf %127, %111 : vector<8x256xf32>
    %c0_32 = arith.constant 0 : index
    %c0_33 = arith.constant 0 : index
    %c0_34 = arith.constant 0 : index
    %129 = vector.load %arg11[%c0_32, %c0_33, %c0_34] : memref<1x8x256xf32, #tpu.memory_space<vmem>>, vector<1x8x256xf32>
    %130 = vector.shape_cast %129 : vector<1x8x256xf32> to vector<8x256xf32>
    %131 = vector.shape_cast %128 : vector<8x256xf32> to vector<1x8x256xf32>
    tpu.vector_store %arg11[%c0_32, %c0_33, %c0_34], %131 {strides = array<i32>} : memref<1x8x256xf32, #tpu.memory_space<vmem>>, vector<1x8x256xf32>,
    return
  }
  func.func @transform_0(%arg0: i32) -> (i32, i32, i32) {
    %c0_i32 = arith.constant 0 : i32
    %c0_i32_0 = arith.constant 0 : i32
    %c0_i32_1 = arith.constant 0 : i32
    return %arg0, %c0_i32, %c0_i32_0 : i32, i32, i32
  }
  func.func @transform_1(%arg0: i32) -> (i32, i32) {
    %c0_i32 = arith.constant 0 : i32
    %c0_i32_0 = arith.constant 0 : i32
    %c0_i32_1 = arith.constant 0 : i32
    return %c0_i32, %c0_i32_0 : i32, i32
  }
  func.func @transform_2(%arg0: i32) -> (i32, i32) {
    %c0_i32 = arith.constant 0 : i32
    %c0_i32_0 = arith.constant 0 : i32
    %c0_i32_1 = arith.constant 0 : i32
    return %c0_i32, %c0_i32_0 : i32, i32
  }
  func.func @transform_3(%arg0: i32) -> (i32, i32) {
    %c0_i32 = arith.constant 0 : i32
    %c0_i32_0 = arith.constant 0 : i32
    %c0_i32_1 = arith.constant 0 : i32
    return %c0_i32, %c0_i32_0 : i32, i32
  }
  func.func @transform_4(%arg0: i32) -> (i32, i32) {
    %c0_i32 = arith.constant 0 : i32
    %c0_i32_0 = arith.constant 0 : i32
    %c0_i32_1 = arith.constant 0 : i32
    return %c0_i32, %c0_i32_0 : i32, i32
  }
  func.func @transform_5(%arg0: i32) -> (i32, i32) {
    %c0_i32 = arith.constant 0 : i32
    %c0_i32_0 = arith.constant 0 : i32
    %c0_i32_1 = arith.constant 0 : i32
    return %c0_i32, %c0_i32_0 : i32, i32
  }
  func.func @transform_6(%arg0: i32) -> (i32, i32) {
    %c0_i32 = arith.constant 0 : i32
    %c0_i32_0 = arith.constant 0 : i32
    %c0_i32_1 = arith.constant 0 : i32
    return %c0_i32, %c0_i32_0 : i32, i32
  }
  func.func @transform_7(%arg0: i32) -> (i32, i32) {
    %c0_i32 = arith.constant 0 : i32
    %c0_i32_0 = arith.constant 0 : i32
    %c0_i32_1 = arith.constant 0 : i32
    return %c0_i32, %c0_i32_0 : i32, i32
  }
  func.func @transform_8(%arg0: i32) -> (i32, i32) {
    %c0_i32 = arith.constant 0 : i32
    %c0_i32_0 = arith.constant 0 : i32
    %c0_i32_1 = arith.constant 0 : i32
    return %c0_i32, %c0_i32_0 : i32, i32
  }
  func.func @transform_9(%arg0: i32) -> (i32, i32) {
    %c0_i32 = arith.constant 0 : i32
    %c0_i32_0 = arith.constant 0 : i32
    %c0_i32_1 = arith.constant 0 : i32
    return %c0_i32, %c0_i32_0 : i32, i32
  }
  func.func @transform_10(%arg0: i32) -> (i32, i32, i32) {
    %c0_i32 = arith.constant 0 : i32
    %c0_i32_0 = arith.constant 0 : i32
    %c0_i32_1 = arith.constant 0 : i32
    return %arg0, %c0_i32, %c0_i32_0 : i32, i32, i32
  }
}

</mosaic_0001>

<llo_original>
// kernel: tpu_custom_call.1
$region0: #{tpu_custom_call.1}
  #allocation0 [shape = 'u32[]', space=smem, size = 0x4, offset = 0x4, fixed_abs, tag = 'smem constant byte address 0x4 - core index']
  #allocation1 [shape = 'u32[144,128]{1,0:T(1,128)}', space=vmem, size = 0x12000, scoped, tag = 'internal scratch']
  %s0 = inlined_call_operand.vmem [shape: f32[2,8,256], index: 0, kind: input, shape index: {}]
  %s1 = inlined_call_operand.vmem [shape: f32[8,1], index: 1, kind: input, shape index: {}]
  %s2 = inlined_call_operand.vmem [shape: f32[8,1], index: 2, kind: input, shape index: {}]
  %s3 = inlined_call_operand.vmem [shape: f32[16,8], index: 3, kind: input, shape index: {}]
  %s4 = inlined_call_operand.vmem [shape: f32[16,1], index: 4, kind: input, shape index: {}]
  %s5 = inlined_call_operand.vmem [shape: f32[16,9], index: 5, kind: input, shape index: {}]
  %s6 = inlined_call_operand.vmem [shape: f32[16,1], index: 6, kind: input, shape index: {}]
  %s7 = inlined_call_operand.vmem [shape: f32[8,8], index: 7, kind: input, shape index: {}]
  %s8 = inlined_call_operand.vmem [shape: f32[8,1], index: 8, kind: input, shape index: {}]
  %s9 = inlined_call_operand.vmem [shape: f32[2,256], index: 9, kind: input, shape index: {}]
  %s10 = inlined_call_operand.hbm [shape: f32[2,8,256], index: 10, kind: output, shape index: {}]
  %s11 = sld [smem:[#allocation0]]
  $region73: #{tpu_custom_call.1} parent=0
    _
  %s13 = ssub.s32 1, %s11
  %s14 = scalar_select 0, %s13, %s11
  $region1: #{tpu_custom_call.1} parent=0
    #allocation2 [shape = 'u8[16384]{0}', space=vmem, size = 0x4000, scoped, tag = 'output window, operand 0']
    #allocation3 [shape = 's32[2]{0}', space=sflag, size = 0x8, scoped, tag = 'scoped memory for tpu_custom_call.1']
    %15 = vsyncpa [#allocation3], 0
    %s16 = scalar_lea.sflag [#allocation3], 1
    %17 = vsyncpa %s16, 0
    loop: start=0, step=1, limit=4
    $region2: #{tpu_custom_call.1} parent=1 // loop_pre_header
      _
    $region3: #{tpu_custom_call.1} parent=1 // loop_header
      %s19 = sphi 0, %s23
      %p20 = scmp.ge.s32.totalorder %s19, 4
      %s29 = sphi 0, %s31
      %s32 = sphi 0, %s29
      %s33 = sphi 0, %s32
      %s49 = sphi 0, %s33
      %s53 = sphi 0, %s53
      %s55 = sphi 0, %s53
      %s56 = sphi 0, %s55
      %s70 = sphi 0, %s56
      %s74 = sphi 0, %s74
      %s76 = sphi 0, %s74
      %s77 = sphi 0, %s76
      %s91 = sphi 0, %s77
      %s95 = sphi 0, %s95
      %s97 = sphi 0, %s95
      %s98 = sphi 0, %s97
      %s112 = sphi 0, %s98
      %s116 = sphi 0, %s116
      %s118 = sphi 0, %s116
      %s119 = sphi 0, %s118
      %s133 = sphi 0, %s119
      %s137 = sphi 0, %s137
      %s139 = sphi 0, %s137
      %s140 = sphi 0, %s139
      %s154 = sphi 0, %s140
      %s158 = sphi 0, %s158
      %s160 = sphi 0, %s158
      %s161 = sphi 0, %s160
      %s175 = sphi 0, %s161
      %s179 = sphi 0, %s179
      %s181 = sphi 0, %s179
      %s182 = sphi 0, %s181
      %s196 = sphi 0, %s182
      %s200 = sphi 0, %s200
      %s202 = sphi 0, %s200
      %s203 = sphi 0, %s202
      %s217 = sphi 0, %s203
      %s221 = sphi 0, %s221
      %s223 = sphi 0, %s221
      %s224 = sphi 0, %s223
      %s238 = sphi 0, %s224
      %s244 = sphi 0, %s246
      %s247 = sphi 0, %s244
      %s248 = sphi 0, %s247
      %s264 = sphi 0, %s248
    $region4: #{tpu_custom_call.1} parent=1 // loop_header_branch
      %22 = sbr.rel (%p20) target = $region8
    $region5: #{tpu_custom_call.1} parent=1 // loop_body
      %s24 = ssub.s32 %s19, 1
      %s25 = ssub.s32 %s19, 2
      %s26 = sadd.s32 %s19, 1
      %s27 = ssub.s32 %s19, %s26
      %p28 = scmp.eq.s32.totalorder %s27, 0
      %s30 = sadd.s32 %s29, 1
      %s31 = scalar_select %p28, %s29, %s30
      %p34 = pneg %p28
      %p35 = scmp.eq.s32.totalorder %s19, 1
      %p36 = por %p34, %p35
      %p37 = scmp.ne.s32.totalorder %s29, %s32
      %p38 = scmp.eq.s32.totalorder %s19, 0
      %p39 = por %p37, %p38
      %p40 = scmp.ne.s32.totalorder %s29, %s32
      %p41 = scmp.eq.s32.totalorder %s24, 1
      %p42 = por %p40, %p41
      %p43 = scmp.ne.s32.totalorder %s32, %s33
      %p44 = scmp.eq.s32.totalorder %s24, 0
      %p45 = por %p43, %p44
      %p46 = scmp.ne.s32.totalorder %s32, %s33
      %p47 = scmp.eq.s32.totalorder %s25, 1
      %p48 = por %p46, %p47
      %p50 = scmp.ne.s32.totalorder %s33, %s49
      %p51 = scmp.eq.s32.totalorder %s25, 0
      %p52 = por %p50, %p51
      %s54 = sadd.s32 %s53, 1
      %p57 = scmp.eq.s32.totalorder %s19, 1
      %p58 = scmp.ne.s32.totalorder %s53, %s55
      %p59 = scmp.eq.s32.totalorder %s19, 0
      %p60 = por %p58, %p59
      %p61 = scmp.ne.s32.totalorder %s53, %s55
      %p62 = scmp.eq.s32.totalorder %s24, 1
      %p63 = por %p61, %p62
      %p64 = scmp.ne.s32.totalorder %s55, %s56
      %p65 = scmp.eq.s32.totalorder %s24, 0
      %p66 = por %p64, %p65
      %p67 = scmp.ne.s32.totalorder %s55, %s56
      %p68 = scmp.eq.s32.totalorder %s25, 1
      %p69 = por %p67, %p68
      %p71 = scmp.ne.s32.totalorder %s56, %s70
      %p72 = scmp.eq.s32.totalorder %s25, 0
      %p73 = por %p71, %p72
      %s75 = sadd.s32 %s74, 1
      %p78 = scmp.eq.s32.totalorder %s19, 1
      %p79 = scmp.ne.s32.totalorder %s74, %s76
      %p80 = scmp.eq.s32.totalorder %s19, 0
      %p81 = por %p79, %p80
      %p82 = scmp.ne.s32.totalorder %s74, %s76
      %p83 = scmp.eq.s32.totalorder %s24, 1
      %p84 = por %p82, %p83
      %p85 = scmp.ne.s32.totalorder %s76, %s77
      %p86 = scmp.eq.s32.totalorder %s24, 0
      %p87 = por %p85, %p86
      %p88 = scmp.ne.s32.totalorder %s76, %s77
      %p89 = scmp.eq.s32.totalorder %s25, 1
      %p90 = por %p88, %p89
      %p92 = scmp.ne.s32.totalorder %s77, %s91
      %p93 = scmp.eq.s32.totalorder %s25, 0
      %p94 = por %p92, %p93
      %s96 = sadd.s32 %s95, 1
      %p99 = scmp.eq.s32.totalorder %s19, 1
      %p100 = scmp.ne.s32.totalorder %s95, %s97
      %p101 = scmp.eq.s32.totalorder %s19, 0
      %p102 = por %p100, %p101
      %p103 = scmp.ne.s32.totalorder %s95, %s97
      %p104 = scmp.eq.s32.totalorder %s24, 1
      %p105 = por %p103, %p104
      %p106 = scmp.ne.s32.totalorder %s97, %s98
      %p107 = scmp.eq.s32.totalorder %s24, 0
      %p108 = por %p106, %p107
      %p109 = scmp.ne.s32.totalorder %s97, %s98
      %p110 = scmp.eq.s32.totalorder %s25, 1
      %p111 = por %p109, %p110
      %p113 = scmp.ne.s32.totalorder %s98, %s112
      %p114 = scmp.eq.s32.totalorder %s25, 0
      %p115 = por %p113, %p114
      %s117 = sadd.s32 %s116, 1
      %p120 = scmp.eq.s32.totalorder %s19, 1
      %p121 = scmp.ne.s32.totalorder %s116, %s118
      %p122 = scmp.eq.s32.totalorder %s19, 0
      %p123 = por %p121, %p122
      %p124 = scmp.ne.s32.totalorder %s116, %s118
      %p125 = scmp.eq.s32.totalorder %s24, 1
      %p126 = por %p124, %p125
      %p127 = scmp.ne.s32.totalorder %s118, %s119
      %p128 = scmp.eq.s32.totalorder %s24, 0
      %p129 = por %p127, %p128
      %p130 = scmp.ne.s32.totalorder %s118, %s119
      %p131 = scmp.eq.s32.totalorder %s25, 1
      %p132 = por %p130, %p131
      %p134 = scmp.ne.s32.totalorder %s119, %s133
      %p135 = scmp.eq.s32.totalorder %s25, 0
      %p136 = por %p134, %p135
      %s138 = sadd.s32 %s137, 1
      %p141 = scmp.eq.s32.totalorder %s19, 1
      %p142 = scmp.ne.s32.totalorder %s137, %s139
      %p143 = scmp.eq.s32.totalorder %s19, 0
      %p144 = por %p142, %p143
      %p145 = scmp.ne.s32.totalorder %s137, %s139
      %p146 = scmp.eq.s32.totalorder %s24, 1
      %p147 = por %p145, %p146
      %p148 = scmp.ne.s32.totalorder %s139, %s140
      %p149 = scmp.eq.s32.totalorder %s24, 0
      %p150 = por %p148, %p149
      %p151 = scmp.ne.s32.totalorder %s139, %s140
      %p152 = scmp.eq.s32.totalorder %s25, 1
      %p153 = por %p151, %p152
      %p155 = scmp.ne.s32.totalorder %s140, %s154
      %p156 = scmp.eq.s32.totalorder %s25, 0
      %p157 = por %p155, %p156
      %s159 = sadd.s32 %s158, 1
      %p162 = scmp.eq.s32.totalorder %s19, 1
      %p163 = scmp.ne.s32.totalorder %s158, %s160
      %p164 = scmp.eq.s32.totalorder %s19, 0
      %p165 = por %p163, %p164
      %p166 = scmp.ne.s32.totalorder %s158, %s160
      %p167 = scmp.eq.s32.totalorder %s24, 1
      %p168 = por %p166, %p167
      %p169 = scmp.ne.s32.totalorder %s160, %s161
      %p170 = scmp.eq.s32.totalorder %s24, 0
      %p171 = por %p169, %p170
      %p172 = scmp.ne.s32.totalorder %s160, %s161
      %p173 = scmp.eq.s32.totalorder %s25, 1
      %p174 = por %p172, %p173
      %p176 = scmp.ne.s32.totalorder %s161, %s175
      %p177 = scmp.eq.s32.totalorder %s25, 0
      %p178 = por %p176, %p177
      %s180 = sadd.s32 %s179, 1
      %p183 = scmp.eq.s32.totalorder %s19, 1
      %p184 = scmp.ne.s32.totalorder %s179, %s181
      %p185 = scmp.eq.s32.totalorder %s19, 0
      %p186 = por %p184, %p185
      %p187 = scmp.ne.s32.totalorder %s179, %s181
      %p188 = scmp.eq.s32.totalorder %s24, 1
      %p189 = por %p187, %p188
      %p190 = scmp.ne.s32.totalorder %s181, %s182
      %p191 = scmp.eq.s32.totalorder %s24, 0
      %p192 = por %p190, %p191
      %p193 = scmp.ne.s32.totalorder %s181, %s182
      %p194 = scmp.eq.s32.totalorder %s25, 1
      %p195 = por %p193, %p194
      %p197 = scmp.ne.s32.totalorder %s182, %s196
      %p198 = scmp.eq.s32.totalorder %s25, 0
      %p199 = por %p197, %p198
      %s201 = sadd.s32 %s200, 1
      %p204 = scmp.eq.s32.totalorder %s19, 1
      %p205 = scmp.ne.s32.totalorder %s200, %s202
      %p206 = scmp.eq.s32.totalorder %s19, 0
      %p207 = por %p205, %p206
      %p208 = scmp.ne.s32.totalorder %s200, %s202
      %p209 = scmp.eq.s32.totalorder %s24, 1
      %p210 = por %p208, %p209
      %p211 = scmp.ne.s32.totalorder %s202, %s203
      %p212 = scmp.eq.s32.totalorder %s24, 0
      %p213 = por %p211, %p212
      %p214 = scmp.ne.s32.totalorder %s202, %s203
      %p215 = scmp.eq.s32.totalorder %s25, 1
      %p216 = por %p214, %p215
      %p218 = scmp.ne.s32.totalorder %s203, %s217
      %p219 = scmp.eq.s32.totalorder %s25, 0
      %p220 = por %p218, %p219
      %s222 = sadd.s32 %s221, 1
      %p225 = scmp.eq.s32.totalorder %s19, 1
      %p226 = scmp.ne.s32.totalorder %s221, %s223
      %p227 = scmp.eq.s32.totalorder %s19, 0
      %p228 = por %p226, %p227
      %p229 = scmp.ne.s32.totalorder %s221, %s223
      %p230 = scmp.eq.s32.totalorder %s24, 1
      %p231 = por %p229, %p230
      %p232 = scmp.ne.s32.totalorder %s223, %s224
      %p233 = scmp.eq.s32.totalorder %s24, 0
      %p234 = por %p232, %p233
      %p235 = scmp.ne.s32.totalorder %s223, %s224
      %p236 = scmp.eq.s32.totalorder %s25, 1
      %p237 = por %p235, %p236
      %p239 = scmp.ne.s32.totalorder %s224, %s238
      %p240 = scmp.eq.s32.totalorder %s25, 0
      %p241 = por %p239, %p240
      %s242 = ssub.s32 %s19, %s26
      %p243 = scmp.eq.s32.totalorder %s242, 0
      %s245 = sadd.s32 %s244, 1
      %s246 = scalar_select %p243, %s244, %s245
      %p249 = pneg %p243
      %p250 = scmp.eq.s32.totalorder %s19, 1
      %p251 = por %p249, %p250
      %p252 = scmp.ne.s32.totalorder %s244, %s247
      %p253 = scmp.eq.s32.totalorder %s19, 0
      %p254 = por %p252, %p253
      %p255 = scmp.ne.s32.totalorder %s244, %s247
      %p256 = scmp.eq.s32.totalorder %s24, 1
      %p257 = por %p255, %p256
      %p258 = scmp.ne.s32.totalorder %s247, %s248
      %p259 = scmp.eq.s32.totalorder %s24, 0
      %p260 = por %p258, %p259
      %p261 = scmp.ne.s32.totalorder %s247, %s248
      %p262 = scmp.eq.s32.totalorder %s25, 1
      %p263 = por %p261, %p262
      %p265 = scmp.ne.s32.totalorder %s248, %s264
      %p266 = scmp.eq.s32.totalorder %s25, 0
      %p267 = por %p265, %p266
      %p268 = scmp.le.s32.totalorder 1, %s19
      %p269 = scmp.lt.s32.totalorder %s19, 3
      %p270 = pnand %p268, %p269
      %p271 = pneg %p270
      // Predicated region
      $region9: #{tpu_custom_call.1} parent=5 // pred_check
        _
      $region10: #{tpu_custom_call.1} parent=5 // pred_check_branch
        %273 = sbr.rel (%p270) target = $region12
      $region11: #{tpu_custom_call.1} parent=5 // pred_region
        %s274 = ssub.s32 %s19, 1
        // Predicated region
        $region13: #{tpu_custom_call.1} parent=11 // pred_check
          %p275 = pneg %p66
        $region14: #{tpu_custom_call.1} parent=11 // pred_check_branch
          %277 = sbr.rel (%p275) target = $region16
        $region15: #{tpu_custom_call.1} parent=11 // pred_region
          _
        $region16: #{tpu_custom_call.1} parent=11 // pred_fallthru
          _
        // Predicated region
        $region17: #{tpu_custom_call.1} parent=11 // pred_check
          %p278 = pneg %p87
        $region18: #{tpu_custom_call.1} parent=11 // pred_check_branch
          %280 = sbr.rel (%p278) target = $region20
        $region19: #{tpu_custom_call.1} parent=11 // pred_region
          _
        $region20: #{tpu_custom_call.1} parent=11 // pred_fallthru
          _
        // Predicated region
        $region21: #{tpu_custom_call.1} parent=11 // pred_check
          %p281 = pneg %p108
        $region22: #{tpu_custom_call.1} parent=11 // pred_check_branch
          %283 = sbr.rel (%p281) target = $region24
        $region23: #{tpu_custom_call.1} parent=11 // pred_region
          _
        $region24: #{tpu_custom_call.1} parent=11 // pred_fallthru
          _
        // Predicated region
        $region25: #{tpu_custom_call.1} parent=11 // pred_check
          %p284 = pneg %p129
        $region26: #{tpu_custom_call.1} parent=11 // pred_check_branch
          %286 = sbr.rel (%p284) target = $region28
        $region27: #{tpu_custom_call.1} parent=11 // pred_region
          _
        $region28: #{tpu_custom_call.1} parent=11 // pred_fallthru
          _
        // Predicated region
        $region29: #{tpu_custom_call.1} parent=11 // pred_check
          %p287 = pneg %p150
        $region30: #{tpu_custom_call.1} parent=11 // pred_check_branch
          %289 = sbr.rel (%p287) target = $region32
        $region31: #{tpu_custom_call.1} parent=11 // pred_region
          _
        $region32: #{tpu_custom_call.1} parent=11 // pred_fallthru
          _
        // Predicated region
        $region33: #{tpu_custom_call.1} parent=11 // pred_check
          %p290 = pneg %p171
        $region34: #{tpu_custom_call.1} parent=11 // pred_check_branch
          %292 = sbr.rel (%p290) target = $region36
        $region35: #{tpu_custom_call.1} parent=11 // pred_region
          _
        $region36: #{tpu_custom_call.1} parent=11 // pred_fallthru
          _
        // Predicated region
        $region37: #{tpu_custom_call.1} parent=11 // pred_check
          %p293 = pneg %p192
        $region38: #{tpu_custom_call.1} parent=11 // pred_check_branch
          %295 = sbr.rel (%p293) target = $region40
        $region39: #{tpu_custom_call.1} parent=11 // pred_region
          _
        $region40: #{tpu_custom_call.1} parent=11 // pred_fallthru
          _
        // Predicated region
        $region41: #{tpu_custom_call.1} parent=11 // pred_check
          %p296 = pneg %p213
        $region42: #{tpu_custom_call.1} parent=11 // pred_check_branch
          %298 = sbr.rel (%p296) target = $region44
        $region43: #{tpu_custom_call.1} parent=11 // pred_region
          _
        $region44: #{tpu_custom_call.1} parent=11 // pred_fallthru
          _
        // Predicated region
        $region45: #{tpu_custom_call.1} parent=11 // pred_check
          %p299 = pneg %p234
        $region46: #{tpu_custom_call.1} parent=11 // pred_check_branch
          %301 = sbr.rel (%p299) target = $region48
        $region47: #{tpu_custom_call.1} parent=11 // pred_region
          _
        $region48: #{tpu_custom_call.1} parent=11 // pred_fallthru
          _
      $region12: #{tpu_custom_call.1} parent=5 // pred_fallthru
        _
      %p302 = scmp.lt.s32.totalorder %s19, 2
      // Predicated region
      $region49: #{tpu_custom_call.1} parent=5 // pred_check
        %p303 = pneg %p302
      $region50: #{tpu_custom_call.1} parent=5 // pred_check_branch
        %305 = sbr.rel (%p303) target = $region52
      $region51: #{tpu_custom_call.1} parent=5 // pred_region
        // Predicated region
        $region53: #{tpu_custom_call.1} parent=51 // pred_check
          %p306 = pneg %p39
        $region54: #{tpu_custom_call.1} parent=51 // pred_check_branch
          %308 = sbr.rel (%p306) target = $region56
        $region55: #{tpu_custom_call.1} parent=51 // pred_region
          %p309 = scmp.lt.s32.totalorder %s19, 1
          %s310 = scalar_select %p309, %s19, 1
          %s311 = smul.addr %s310, 2
          %s312 = smul.addr %s311, 8
          %s313 = scalar_lea.vmem %s0, %s312
        $region56: #{tpu_custom_call.1} parent=51 // pred_fallthru
          _
      $region52: #{tpu_custom_call.1} parent=5 // pred_fallthru
        _
      %p314 = scmp.le.s32.totalorder 1, %s19
      %p315 = scmp.lt.s32.totalorder %s19, 3
      %p316 = pnand %p314, %p315
      %p317 = pneg %p316
      // Predicated region
      $region57: #{tpu_custom_call.1} parent=5 // pred_check
        _
      $region58: #{tpu_custom_call.1} parent=5 // pred_check_branch
        %319 = sbr.rel (%p316) target = $region60
      $region59: #{tpu_custom_call.1} parent=5 // pred_region
        %s320 = ssub.s32 %s19, 1
        %p321 = scmp.lt.s32.totalorder %s24, 1
        %s322 = scalar_select %p321, %s24, 1
        %s323 = smul.addr %s322, 2
        %s324 = smul.addr %s323, 8
        %s325 = scalar_lea.vmem %s0, %s324
        %p326 = pneg %p45
        %p327 = pneg %p42
        %p328 = pneg %p66
        %p329 = pneg %p63
        %p330 = pneg %p87
        %p331 = pneg %p84
        %p332 = pneg %p108
        %p333 = pneg %p105
        %p334 = pneg %p129
        %p335 = pneg %p126
        %p336 = pneg %p150
        %p337 = pneg %p147
        %p338 = pneg %p171
        %p339 = pneg %p168
        %p340 = pneg %p192
        %p341 = pneg %p189
        %p342 = pneg %p213
        %p343 = pneg %p210
        %p344 = pneg %p234
        %p345 = pneg %p231
        %p346 = pneg %p260
        %p347 = pneg %p257
        %s348 = sand.u32 %s247, 1
        %s349 = scalar_lea.sflag [#allocation3], %s348
        %s350 = sand.u32 %s247, 1
        %s351 = smul.addr %s350, 16
        %s352 = scalar_lea.vmem [#allocation2], %s351
        %p353 = scmp.lt.s32.totalorder %s24, 1
        %s354 = scalar_select %p353, %s24, 1
        %s355 = smul.addr %s354, 2
        %s356 = smul.addr %s355, 8
        %s357 = scalar_lea.vmem %s0, %s356
        %v358 = vld [vmem:[%s1] sm:$0xff]
        %v359 = vld [vmem:[%s2] sm:$0xff]
        %v360 = vld [vmem:[%s3] sm:$0xff]
        %v361 = vld [vmem:[%s3 + $0x8] sm:$0xff]
        %v362 = vld [vmem:[%s4] sm:$0xff]
        %v363 = vld [vmem:[%s4 + $0x8] sm:$0xff]
        %v364 = vld [vmem:[%s5] sm:$0xff]
        %v365 = vld [vmem:[%s5 + $0x8] sm:$0xff]
        %v366 = vld [vmem:[%s6] sm:$0xff]
        %v367 = vld [vmem:[%s6 + $0x8] sm:$0xff]
        %v368 = vld [vmem:[%s7] sm:$0xff]
        %v369 = vld [vmem:[%s8] sm:$0xff]
        %v370 = vlaneseq
        %v371 = vand.u32 %v370, 127
        %v372 = vadd.s32 %v371, 128
        %vm373 = vcmp.ge.s32.totalorder %v371, 16
        %vm374 = vcmp.ge.s32.totalorder %v372, 16
        %v375 = vsel %vm373, 1, 0
        %v376 = vsel %vm374, 1, 0
        %v377 = vcvt.s32.f32 %v375
        %v378 = vcvt.s32.f32 %v376
        %vm379 = vcmp.lt.s32.totalorder %v371, 240
        %vm380 = vcmp.lt.s32.totalorder %v372, 240
        %v381 = vsel %vm379, 1, 0
        %v382 = vsel %vm380, 1, 0
        %v383 = vcvt.s32.f32 %v381
        %v384 = vcvt.s32.f32 %v382
        %v385 = vld [vmem:[%s9] ss:$2 sm:$0x3]
        %s386 = scalar_lea.vmem %s9, 1
        %v387 = vld [vmem:[%s386] ss:$2 sm:$0x3]
        %v389 = vlaneseq
        %v390 = vshrl.u32 %v389, 7
        %v391 = vsub.s32 0, %v390
        %v392 = vrot.slane %v385, %v391
        %v393 = vlaneseq
        %v394 = vshrl.u32 %v393, 7
        %v395 = vsub.s32 1, %v394
        %v396 = vrot.slane %v385, %v395
        %v399 = vmul.f32 %v377, %v392
        %v400 = vmul.f32 %v378, %v396
        %v402 = vlaneseq
        %v403 = vshrl.u32 %v402, 7
        %v404 = vsub.s32 0, %v403
        %v405 = vrot.slane %v387, %v404
        %v406 = vlaneseq
        %v407 = vshrl.u32 %v406, 7
        %v408 = vsub.s32 1, %v407
        %v409 = vrot.slane %v387, %v408
        %v412 = vmul.f32 %v377, %v405
        %v413 = vmul.f32 %v378, %v409
        %v414 = vmul.f32 %v383, %v392
        %v415 = vmul.f32 %v384, %v396
        %v416 = vmul.f32 %v383, %v405
        %v417 = vmul.f32 %v384, %v409
        %v418 = vld [vmem:[%s357] sm:$0xff]
        %v419 = vld [vmem:[%s357 + $0x8] sm:$0xff]
        %v420 = vrot.slane %v418, 4
        %v421 = vadd.f32 %v418, %v420
        %v422 = vrot.slane %v421, 2
        %v423 = vadd.f32 %v421, %v422
        %v424 = vrot.slane %v423, 1
        %v425 = vadd.f32 %v423, %v424
        %v426 = vrot.slane %v419, 4
        %v427 = vadd.f32 %v419, %v426
        %v428 = vrot.slane %v427, 2
        %v429 = vadd.f32 %v427, %v428
        %v430 = vrot.slane %v429, 1
        %v431 = vadd.f32 %v429, %v430
        %v432 = vmul.f32 %v425, 0.125
        %v433 = vmul.f32 %v431, 0.125
        %v434 = vsub.f32 %v418, %v432
        %v435 = vsub.f32 %v419, %v433
        %v436 = vmul.f32 %v434, %v434
        %v437 = vmul.f32 %v435, %v435
        %v438 = vrot.slane %v436, 4
        %v439 = vadd.f32 %v436, %v438
        %v440 = vrot.slane %v439, 2
        %v441 = vadd.f32 %v439, %v440
        %v442 = vrot.slane %v441, 1
        %v443 = vadd.f32 %v441, %v442
        %v444 = vrot.slane %v437, 4
        %v445 = vadd.f32 %v437, %v444
        %v446 = vrot.slane %v445, 2
        %v447 = vadd.f32 %v445, %v446
        %v448 = vrot.slane %v447, 1
        %v449 = vadd.f32 %v447, %v448
        %v450 = vmul.f32 %v443, 0.125
        %v451 = vmul.f32 %v449, 0.125
        %v452 = vadd.f32 %v450, 1e-06
        %v453 = vadd.f32 %v451, 1e-06
        %v454 = vrsqrt.pop %v452
        %v455 = vrsqrt.pop %v453
        %v456 = vmul.f32 %v434, %v454
        %v457 = vmul.f32 %v435, %v455
        %459 = vset.pattern.permute.xlu0 0
        %460 = vperm.xlu0 %459, %v358
        %v461 = vpop.permute.xlu0 %460
        %v463 = vmul.f32 %v456, %v461
        %v464 = vmul.f32 %v457, %v461
        %466 = vset.pattern.permute.xlu0 0
        %467 = vperm.xlu0 %466, %v359
        %v468 = vpop.permute.xlu0 %467
        %v470 = vadd.f32 %v463, %v468
        %v471 = vadd.f32 %v464, %v468
        %473 = vset.pattern.permute.xlu0 0
        %474 = vperm.xlu0 %473, %v362
        %v475 = vpop.permute.xlu0 %474
        %478 = vset.pattern.permute.xlu0 0
        %479 = vperm.xlu0 %478, %v363
        %v480 = vpop.permute.xlu0 %479
        %vm482 = vcmask 64512
        %v484 = vsel %vm482, %v360, 0
        %v487 = vsel %vm482, %v361, 0
        %489 = vmatprep.subr.mxu0 0.0
        %490 = vmatpush1.msra.mxu0 0.0
        %491 = vmatprep.subr.mxu0 0.0
        %492 = vmatpush1.msra.mxu0 0.0
        %493 = vmatprep.subr.mxu0 0.0
        %494 = vmatpush1.msra.mxu0 0.0
        %495 = vmatprep.subr.mxu0 0.0
        %496 = vmatpush1.msra.mxu0 0.0
        %497 = vmatprep.subr.mxu0 0.0
        %498 = vmatpush1.msra.mxu0 0.0
        %499 = vmatprep.subr.mxu0 0.0
        %500 = vmatpush1.msra.mxu0 0.0
        %501 = vmatprep.subr.mxu0 0.0
        %502 = vmatpush1.msra.mxu0 0.0
        %503 = vmatprep.subr.mxu0 0.0
        %504 = vmatpush1.msra.mxu0 0.0
        %505 = vmatprep.subr.mxu0 0.0
        %506 = vmatpush1.msra.mxu0 0.0
        %507 = vmatprep.subr.mxu0 0.0
        %508 = vmatpush1.msra.mxu0 0.0
        %509 = vmatprep.subr.mxu0 0.0
        %510 = vmatpush1.msra.mxu0 0.0
        %511 = vmatprep.subr.mxu0 0.0
        %512 = vmatpush1.msra.mxu0 0.0
        %513 = vmatprep.subr.mxu0 0.0
        %514 = vmatpush1.msra.mxu0 0.0
        %515 = vmatprep.subr.mxu0 0.0
        %516 = vmatpush1.msra.mxu0 0.0
        %517 = vmatprep.subr.mxu0 0.0
        %518 = vmatpush1.msra.mxu0 0.0
        %519 = vmatprep.subr.mxu0 %v471
        %520 = vmatpush1.msra.mxu0 %v470
        %521 = vmatprep.subr.mxu0 0.0
        %522 = vmatpush2.msra.mxu0 0.0
        %523 = vmatprep.subr.mxu0 0.0
        %524 = vmatpush2.msra.mxu0 0.0
        %525 = vmatprep.subr.mxu0 0.0
        %526 = vmatpush2.msra.mxu0 0.0
        %527 = vmatprep.subr.mxu0 0.0
        %528 = vmatpush2.msra.mxu0 0.0
        %529 = vmatprep.subr.mxu0 0.0
        %530 = vmatpush2.msra.mxu0 0.0
        %531 = vmatprep.subr.mxu0 0.0
        %532 = vmatpush2.msra.mxu0 0.0
        %533 = vmatprep.subr.mxu0 0.0
        %534 = vmatpush2.msra.mxu0 0.0
        %535 = vmatprep.subr.mxu0 0.0
        %536 = vmatpush2.msra.mxu0 0.0
        %537 = vmatprep.subr.mxu0 0.0
        %538 = vmatpush2.msra.mxu0 0.0
        %539 = vmatprep.subr.mxu0 0.0
        %540 = vmatpush2.msra.mxu0 0.0
        %541 = vmatprep.subr.mxu0 0.0
        %542 = vmatpush2.msra.mxu0 0.0
        %543 = vmatprep.subr.mxu0 0.0
        %544 = vmatpush2.msra.mxu0 0.0
        %545 = vmatprep.subr.mxu0 0.0
        %546 = vmatpush2.msra.mxu0 0.0
        %547 = vmatprep.subr.mxu0 0.0
        %548 = vmatpush2.msra.mxu0 0.0
        %549 = vmatprep.subr.mxu0 0.0
        %550 = vmatpush2.msra.mxu0 0.0
        %551 = vmatprep.subr.mxu0 0.0
        %552 = vmatpush2.msra.mxu0 0.0
        %553 = vmatprep.mubr.f32.mxu0 0.0
        %554 = vmatmul.mubr.f32.gmra.mxu0 %v484
        %v555 = vpop.f32.mrf.mxu0
        %v556 = vadd.f32 %v475, %v555
        %v557 = vpop.f32.mrf.mxu0
        %v558 = vadd.f32 %v475, %v557
        %559 = vmatprep.mubr.f32.mxu0 0.0
        %560 = vmatmul.mubr.f32.gmra.mxu0 %v487
        %v561 = vpop.f32.mrf.mxu0
        %v562 = vadd.f32 %v480, %v561
        %v563 = vpop.f32.mrf.mxu0
        %v564 = vadd.f32 %v480, %v563
        %565 = vdwg.mxu0
        %567 = vset.pattern.permute.xlu0 4
        %568 = vperm.xlu0 %567, %v364
        %v569 = vpop.permute.xlu0 %568
        %572 = vset.pattern.permute.xlu0 4
        %573 = vperm.xlu0 %572, %v365
        %v574 = vpop.permute.xlu0 %573
        %v576 = vmul.f32 %v569, %v556
        %v577 = vmul.f32 %v569, %v558
        %v578 = vmul.f32 %v574, %v562
        %v579 = vmul.f32 %v574, %v564
        %580 = vrot.lane.b32.xlu0 %v556, 17
        %v581 = vpop.permute.xlu0 %580
        %582 = vrot.lane.b32.xlu0 %v562, 17
        %v583 = vpop.permute.xlu0 %582
        %584 = vrot.lane.b32.xlu0 %v558, 17
        %v585 = vpop.permute.xlu0 %584
        %586 = vrot.lane.b32.xlu0 %v564, 17
        %v587 = vpop.permute.xlu0 %586
        %vm588 = vcmp.lt.s32.totalorder %v371, 17
        %v589 = vsel %vm588, %v581, %v585
        %v590 = vsel %vm588, %v583, %v587
        %v591 = vsel %vm588, %v585, %v581
        %v592 = vsel %vm588, %v587, %v583
        %v593 = vlaneseq
        %v594 = vshrl.u32 %v593, 7
        %v595 = vsub.s32 0, %v594
        %v596 = vrot.slane %v399, %v595
        %v597 = vlaneseq
        %v598 = vshrl.u32 %v597, 7
        %v599 = vsub.s32 0, %v598
        %v600 = vrot.slane %v400, %v599
        %v601 = vmul.f32 %v591, %v596
        %v602 = vmul.f32 %v589, %v600
        %v603 = vmul.f32 %v592, %v596
        %v604 = vmul.f32 %v590, %v600
        %605 = vset.pattern.permute.xlu0 0
        %606 = vperm.xlu0 %605, %v364
        %v607 = vpop.permute.xlu0 %606
        %609 = vset.pattern.permute.xlu0 0
        %610 = vperm.xlu0 %609, %v365
        %v611 = vpop.permute.xlu0 %610
        %v613 = vmul.f32 %v607, %v601
        %v614 = vmul.f32 %v607, %v602
        %v615 = vmul.f32 %v611, %v603
        %v616 = vmul.f32 %v611, %v604
        %v617 = vadd.f32 %v576, %v613
        %v618 = vadd.f32 %v577, %v614
        %v619 = vadd.f32 %v578, %v615
        %v620 = vadd.f32 %v579, %v616
        %621 = vrot.lane.b32.xlu0 %v556, 16
        %v622 = vpop.permute.xlu0 %621
        %623 = vrot.lane.b32.xlu0 %v562, 16
        %v624 = vpop.permute.xlu0 %623
        %625 = vrot.lane.b32.xlu0 %v558, 16
        %v626 = vpop.permute.xlu0 %625
        %627 = vrot.lane.b32.xlu0 %v564, 16
        %v628 = vpop.permute.xlu0 %627
        %vm629 = vcmp.lt.s32.totalorder %v371, 16
        %v630 = vsel %vm629, %v622, %v626
        %v631 = vsel %vm629, %v624, %v628
        %v632 = vsel %vm629, %v626, %v622
        %v633 = vsel %vm629, %v628, %v624
        %v634 = vmul.f32 %v632, %v377
        %v635 = vmul.f32 %v630, %v378
        %v636 = vmul.f32 %v633, %v377
        %v637 = vmul.f32 %v631, %v378
        %638 = vset.pattern.permute.xlu0 1
        %639 = vperm.xlu0 %638, %v364
        %v640 = vpop.permute.xlu0 %639
        %642 = vset.pattern.permute.xlu0 1
        %643 = vperm.xlu0 %642, %v365
        %v644 = vpop.permute.xlu0 %643
        %v646 = vmul.f32 %v640, %v634
        %v647 = vmul.f32 %v640, %v635
        %v648 = vmul.f32 %v644, %v636
        %v649 = vmul.f32 %v644, %v637
        %v650 = vadd.f32 %v617, %v646
        %v651 = vadd.f32 %v618, %v647
        %v652 = vadd.f32 %v619, %v648
        %v653 = vadd.f32 %v620, %v649
        %654 = vrot.lane.b32.xlu0 %v556, 15
        %v655 = vpop.permute.xlu0 %654
        %656 = vrot.lane.b32.xlu0 %v562, 15
        %v657 = vpop.permute.xlu0 %656
        %658 = vrot.lane.b32.xlu0 %v558, 15
        %v659 = vpop.permute.xlu0 %658
        %660 = vrot.lane.b32.xlu0 %v564, 15
        %v661 = vpop.permute.xlu0 %660
        %vm662 = vcmp.lt.s32.totalorder %v371, 15
        %v663 = vsel %vm662, %v655, %v659
        %v664 = vsel %vm662, %v657, %v661
        %v665 = vsel %vm662, %v659, %v655
        %v666 = vsel %vm662, %v661, %v657
        %v667 = vlaneseq
        %v668 = vshrl.u32 %v667, 7
        %v669 = vsub.s32 0, %v668
        %v670 = vrot.slane %v412, %v669
        %v671 = vlaneseq
        %v672 = vshrl.u32 %v671, 7
        %v673 = vsub.s32 0, %v672
        %v674 = vrot.slane %v413, %v673
        %v675 = vmul.f32 %v665, %v670
        %v676 = vmul.f32 %v663, %v674
        %v677 = vmul.f32 %v666, %v670
        %v678 = vmul.f32 %v664, %v674
        %679 = vset.pattern.permute.xlu0 2
        %680 = vperm.xlu0 %679, %v364
        %v681 = vpop.permute.xlu0 %680
        %683 = vset.pattern.permute.xlu0 2
        %684 = vperm.xlu0 %683, %v365
        %v685 = vpop.permute.xlu0 %684
        %v687 = vmul.f32 %v681, %v675
        %v688 = vmul.f32 %v681, %v676
        %v689 = vmul.f32 %v685, %v677
        %v690 = vmul.f32 %v685, %v678
        %v691 = vadd.f32 %v650, %v687
        %v692 = vadd.f32 %v651, %v688
        %v693 = vadd.f32 %v652, %v689
        %v694 = vadd.f32 %v653, %v690
        %695 = vrot.lane.b32.xlu0 %v556, 1
        %v696 = vpop.permute.xlu0 %695
        %697 = vrot.lane.b32.xlu0 %v562, 1
        %v698 = vpop.permute.xlu0 %697
        %699 = vrot.lane.b32.xlu0 %v558, 1
        %v700 = vpop.permute.xlu0 %699
        %701 = vrot.lane.b32.xlu0 %v564, 1
        %v702 = vpop.permute.xlu0 %701
        %vm703 = vcmp.lt.s32.totalorder %v371, 1
        %v704 = vsel %vm703, %v696, %v700
        %v705 = vsel %vm703, %v698, %v702
        %v706 = vsel %vm703, %v700, %v696
        %v707 = vsel %vm703, %v702, %v698
        %v708 = vmul.f32 %v706, %v392
        %v709 = vmul.f32 %v704, %v396
        %v710 = vmul.f32 %v707, %v392
        %v711 = vmul.f32 %v705, %v396
        %712 = vset.pattern.permute.xlu0 3
        %713 = vperm.xlu0 %712, %v364
        %v714 = vpop.permute.xlu0 %713
        %716 = vset.pattern.permute.xlu0 3
        %717 = vperm.xlu0 %716, %v365
        %v718 = vpop.permute.xlu0 %717
        %v720 = vmul.f32 %v714, %v708
        %v721 = vmul.f32 %v714, %v709
        %v722 = vmul.f32 %v718, %v710
        %v723 = vmul.f32 %v718, %v711
        %v724 = vadd.f32 %v691, %v720
        %v725 = vadd.f32 %v692, %v721
        %v726 = vadd.f32 %v693, %v722
        %v727 = vadd.f32 %v694, %v723
        %728 = vrot.lane.b32.xlu0 %v556, 127
        %v729 = vpop.permute.xlu0 %728
        %730 = vrot.lane.b32.xlu0 %v562, 127
        %v731 = vpop.permute.xlu0 %730
        %732 = vrot.lane.b32.xlu0 %v558, 127
        %v733 = vpop.permute.xlu0 %732
        %734 = vrot.lane.b32.xlu0 %v564, 127
        %v735 = vpop.permute.xlu0 %734
        %vm736 = vcmp.lt.s32.totalorder %v371, 127
        %v737 = vsel %vm736, %v729, %v733
        %v738 = vsel %vm736, %v731, %v735
        %v739 = vsel %vm736, %v733, %v729
        %v740 = vsel %vm736, %v735, %v731
        %v741 = vmul.f32 %v737, %v405
        %v742 = vmul.f32 %v739, %v409
        %v743 = vmul.f32 %v738, %v405
        %v744 = vmul.f32 %v740, %v409
        %745 = vset.pattern.permute.xlu0 5
        %746 = vperm.xlu0 %745, %v364
        %v747 = vpop.permute.xlu0 %746
        %749 = vset.pattern.permute.xlu0 5
        %750 = vperm.xlu0 %749, %v365
        %v751 = vpop.permute.xlu0 %750
        %v753 = vmul.f32 %v747, %v741
        %v754 = vmul.f32 %v747, %v742
        %v755 = vmul.f32 %v751, %v743
        %v756 = vmul.f32 %v751, %v744
        %v757 = vadd.f32 %v724, %v753
        %v758 = vadd.f32 %v725, %v754
        %v759 = vadd.f32 %v726, %v755
        %v760 = vadd.f32 %v727, %v756
        %761 = vrot.lane.b32.xlu0 %v556, 113
        %v762 = vpop.permute.xlu0 %761
        %763 = vrot.lane.b32.xlu0 %v562, 113
        %v764 = vpop.permute.xlu0 %763
        %765 = vrot.lane.b32.xlu0 %v558, 113
        %v766 = vpop.permute.xlu0 %765
        %767 = vrot.lane.b32.xlu0 %v564, 113
        %v768 = vpop.permute.xlu0 %767
        %vm769 = vcmp.lt.s32.totalorder %v371, 113
        %v770 = vsel %vm769, %v762, %v766
        %v771 = vsel %vm769, %v764, %v768
        %v772 = vsel %vm769, %v766, %v762
        %v773 = vsel %vm769, %v768, %v764
        %v774 = vlaneseq
        %v775 = vshrl.u32 %v774, 7
        %v776 = vsub.s32 0, %v775
        %v777 = vrot.slane %v414, %v776
        %v778 = vlaneseq
        %v779 = vshrl.u32 %v778, 7
        %v780 = vsub.s32 0, %v779
        %v781 = vrot.slane %v415, %v780
        %v782 = vmul.f32 %v770, %v777
        %v783 = vmul.f32 %v772, %v781
        %v784 = vmul.f32 %v771, %v777
        %v785 = vmul.f32 %v773, %v781
        %786 = vset.pattern.permute.xlu0 6
        %787 = vperm.xlu0 %786, %v364
        %v788 = vpop.permute.xlu0 %787
        %790 = vset.pattern.permute.xlu0 6
        %791 = vperm.xlu0 %790, %v365
        %v792 = vpop.permute.xlu0 %791
        %v794 = vmul.f32 %v788, %v782
        %v795 = vmul.f32 %v788, %v783
        %v796 = vmul.f32 %v792, %v784
        %v797 = vmul.f32 %v792, %v785
        %v798 = vadd.f32 %v757, %v794
        %v799 = vadd.f32 %v758, %v795
        %v800 = vadd.f32 %v759, %v796
        %v801 = vadd.f32 %v760, %v797
        %802 = vrot.lane.b32.xlu0 %v556, 112
        %v803 = vpop.permute.xlu0 %802
        %804 = vrot.lane.b32.xlu0 %v562, 112
        %v805 = vpop.permute.xlu0 %804
        %806 = vrot.lane.b32.xlu0 %v558, 112
        %v807 = vpop.permute.xlu0 %806
        %808 = vrot.lane.b32.xlu0 %v564, 112
        %v809 = vpop.permute.xlu0 %808
        %vm810 = vcmp.lt.s32.totalorder %v371, 112
        %v811 = vsel %vm810, %v803, %v807
        %v812 = vsel %vm810, %v805, %v809
        %v813 = vsel %vm810, %v807, %v803
        %v814 = vsel %vm810, %v809, %v805
        %v815 = vmul.f32 %v811, %v383
        %v816 = vmul.f32 %v813, %v384
        %v817 = vmul.f32 %v812, %v383
        %v818 = vmul.f32 %v814, %v384
        %819 = vset.pattern.permute.xlu0 7
        %820 = vperm.xlu0 %819, %v364
        %v821 = vpop.permute.xlu0 %820
        %823 = vset.pattern.permute.xlu0 7
        %824 = vperm.xlu0 %823, %v365
        %v825 = vpop.permute.xlu0 %824
        %v827 = vmul.f32 %v821, %v815
        %v828 = vmul.f32 %v821, %v816
        %v829 = vmul.f32 %v825, %v817
        %v830 = vmul.f32 %v825, %v818
        %v831 = vadd.f32 %v798, %v827
        %v832 = vadd.f32 %v799, %v828
        %v833 = vadd.f32 %v800, %v829
        %v834 = vadd.f32 %v801, %v830
        %835 = vrot.lane.b32.xlu0 %v556, 111
        %v836 = vpop.permute.xlu0 %835
        %837 = vrot.lane.b32.xlu0 %v562, 111
        %v838 = vpop.permute.xlu0 %837
        %839 = vrot.lane.b32.xlu0 %v558, 111
        %v840 = vpop.permute.xlu0 %839
        %841 = vrot.lane.b32.xlu0 %v564, 111
        %v842 = vpop.permute.xlu0 %841
        %vm843 = vcmp.lt.s32.totalorder %v371, 111
        %v844 = vsel %vm843, %v836, %v840
        %v845 = vsel %vm843, %v838, %v842
        %v846 = vsel %vm843, %v840, %v836
        %v847 = vsel %vm843, %v842, %v838
        %v848 = vlaneseq
        %v849 = vshrl.u32 %v848, 7
        %v850 = vsub.s32 0, %v849
        %v851 = vrot.slane %v416, %v850
        %v852 = vlaneseq
        %v853 = vshrl.u32 %v852, 7
        %v854 = vsub.s32 0, %v853
        %v855 = vrot.slane %v417, %v854
        %v856 = vmul.f32 %v844, %v851
        %v857 = vmul.f32 %v846, %v855
        %v858 = vmul.f32 %v845, %v851
        %v859 = vmul.f32 %v847, %v855
        %860 = vset.pattern.permute.xlu0 8
        %861 = vperm.xlu0 %860, %v364
        %v862 = vpop.permute.xlu0 %861
        %864 = vset.pattern.permute.xlu0 8
        %865 = vperm.xlu0 %864, %v365
        %v866 = vpop.permute.xlu0 %865
        %v868 = vmul.f32 %v862, %v856
        %v869 = vmul.f32 %v862, %v857
        %v870 = vmul.f32 %v866, %v858
        %v871 = vmul.f32 %v866, %v859
        %v872 = vadd.f32 %v831, %v868
        %v873 = vadd.f32 %v832, %v869
        %v874 = vadd.f32 %v833, %v870
        %v875 = vadd.f32 %v834, %v871
        %877 = vset.pattern.permute.xlu0 0
        %878 = vperm.xlu0 %877, %v366
        %v879 = vpop.permute.xlu0 %878
        %882 = vset.pattern.permute.xlu0 0
        %883 = vperm.xlu0 %882, %v367
        %v884 = vpop.permute.xlu0 %883
        %v886 = vadd.f32 %v872, %v879
        %v887 = vadd.f32 %v873, %v879
        %v888 = vadd.f32 %v874, %v884
        %v889 = vadd.f32 %v875, %v884
        %v890 = vmul.f32 %v886, %v888
        %v891 = vmul.f32 %v887, %v889
        %v892 = vadd.f32 %v890, %v891
        %893 = vadd.xlane.f32.xlu0 %v892
        %v894 = vpop.xlane.xlu0 %893
        %v895 = vmul.f32 %v894, 0.00390625
        %v896 = vmax.f32 %v890, %v891
        %897 = vmax.xlane.f32.xlu0 %v896
        %v898 = vpop.xlane.xlu0 %897
        %v899 = vlaneseq
        %v900 = vshrl.u32 %v899, 7
        %vm901 = vcmp.lt.s32.totalorder %v900, 4
        %v902 = vsel %vm901, %v895, %v898
        %v904 = vsel %vm482, %v368, 0
        %906 = vmatprep.subr.mxu0 0.0
        %907 = vmatpush1.msra.mxu0 0.0
        %908 = vmatprep.subr.mxu0 0.0
        %909 = vmatpush1.msra.mxu0 0.0
        %910 = vmatprep.subr.mxu0 0.0
        %911 = vmatpush1.msra.mxu0 0.0
        %912 = vmatprep.subr.mxu0 0.0
        %913 = vmatpush1.msra.mxu0 0.0
        %914 = vmatprep.subr.mxu0 0.0
        %915 = vmatpush1.msra.mxu0 0.0
        %916 = vmatprep.subr.mxu0 0.0
        %917 = vmatpush1.msra.mxu0 0.0
        %918 = vmatprep.subr.mxu0 0.0
        %919 = vmatpush1.msra.mxu0 0.0
        %920 = vmatprep.subr.mxu0 0.0
        %921 = vmatpush1.msra.mxu0 0.0
        %922 = vmatprep.subr.mxu0 0.0
        %923 = vmatpush1.msra.mxu0 0.0
        %924 = vmatprep.subr.mxu0 0.0
        %925 = vmatpush1.msra.mxu0 0.0
        %926 = vmatprep.subr.mxu0 0.0
        %927 = vmatpush1.msra.mxu0 0.0
        %928 = vmatprep.subr.mxu0 0.0
        %929 = vmatpush1.msra.mxu0 0.0
        %930 = vmatprep.subr.mxu0 0.0
        %931 = vmatpush1.msra.mxu0 0.0
        %932 = vmatprep.subr.mxu0 0.0
        %933 = vmatpush1.msra.mxu0 0.0
        %934 = vmatprep.subr.mxu0 0.0
        %935 = vmatpush1.msra.mxu0 0.0
        %936 = vmatprep.subr.mxu0 0.0
        %937 = vmatpush1.msra.mxu0 %v902
        %938 = vmatprep.subr.mxu0 0.0
        %939 = vmatpush2.msra.mxu0 0.0
        %940 = vmatprep.subr.mxu0 0.0
        %941 = vmatpush2.msra.mxu0 0.0
        %942 = vmatprep.subr.mxu0 0.0
        %943 = vmatpush2.msra.mxu0 0.0
        %944 = vmatprep.subr.mxu0 0.0
        %945 = vmatpush2.msra.mxu0 0.0
        %946 = vmatprep.subr.mxu0 0.0
        %947 = vmatpush2.msra.mxu0 0.0
        %948 = vmatprep.subr.mxu0 0.0
        %949 = vmatpush2.msra.mxu0 0.0
        %950 = vmatprep.subr.mxu0 0.0
        %951 = vmatpush2.msra.mxu0 0.0
        %952 = vmatprep.subr.mxu0 0.0
        %953 = vmatpush2.msra.mxu0 0.0
        %954 = vmatprep.subr.mxu0 0.0
        %955 = vmatpush2.msra.mxu0 0.0
        %956 = vmatprep.subr.mxu0 0.0
        %957 = vmatpush2.msra.mxu0 0.0
        %958 = vmatprep.subr.mxu0 0.0
        %959 = vmatpush2.msra.mxu0 0.0
        %960 = vmatprep.subr.mxu0 0.0
        %961 = vmatpush2.msra.mxu0 0.0
        %962 = vmatprep.subr.mxu0 0.0
        %963 = vmatpush2.msra.mxu0 0.0
        %964 = vmatprep.subr.mxu0 0.0
        %965 = vmatpush2.msra.mxu0 0.0
        %966 = vmatprep.subr.mxu0 0.0
        %967 = vmatpush2.msra.mxu0 0.0
        %968 = vmatprep.subr.mxu0 0.0
        %969 = vmatpush2.msra.mxu0 0.0
        %970 = vmatprep.mubr.f32.mxu0 0.0
        %971 = vmatmul.mubr.f32.gmra.mxu0 %v904
        %v972 = vpop.f32.mrf.mxu0
        %v973 = vadd.f32 0.0, %v972
        %v974 = vpop.f32.mrf.mxu0
        %975 = vdwg.mxu0
        %v976 = vadd.f32 %v973, %v369
        %978 = vset.pattern.permute.xlu0 0
        %979 = vperm.xlu0 %978, %v976
        %v980 = vpop.permute.xlu0 %979
        %v982 = vmul.f32 %v980, %v890
        %v983 = vmul.f32 %v980, %v891
        %984 = vst [vmem:[%s352] sm:$0xff] %v982
        %985 = vst [vmem:[%s352 + $0x8] sm:$0xff] %v983
        %s986 = sand.u32 %s247, 1
        %s987 = scalar_lea.sflag [#allocation3], %s986
        %s988 = sand.u32 %s247, 1
        %s989 = smul.addr %s988, 16
        %s990 = scalar_lea.vmem [#allocation2], %s989
        // Predicated region
        $region61: #{tpu_custom_call.1} parent=59 // pred_check
          %p991 = pneg %p257
        $region62: #{tpu_custom_call.1} parent=59 // pred_check_branch
          %993 = sbr.rel (%p991) target = $region64
        $region63: #{tpu_custom_call.1} parent=59 // pred_region
          %s995 = ssub.s32 256, 256
          %996 = vsyncadd %s987, %s995
          %s997 = smul.addr %s24, 2
          %s998 = smul.addr %s997, 128
          %s999 = scalar_lea.hbm %s10, %s998
          %s1001 = sshll.u32 %s990, 4
          %s1002 = int_to_ptr.vmem [resolvable:$true] %s1001
          %1004 = dma.vmem_to_hbm [thread:$0]  %s1002, 256, %s999, %s987
        $region64: #{tpu_custom_call.1} parent=59 // pred_fallthru
          _
      $region60: #{tpu_custom_call.1} parent=5 // pred_fallthru
        _
      %p1005 = scmp.le.s32.totalorder 2, %s19
      // Predicated region
      $region65: #{tpu_custom_call.1} parent=5 // pred_check
        %p1006 = pneg %p1005
      $region66: #{tpu_custom_call.1} parent=5 // pred_check_branch
        %1008 = sbr.rel (%p1006) target = $region68
      $region67: #{tpu_custom_call.1} parent=5 // pred_region
        %s1009 = ssub.s32 %s19, 2
        // Predicated region
        $region69: #{tpu_custom_call.1} parent=67 // pred_check
          %p1010 = pneg %p263
        $region70: #{tpu_custom_call.1} parent=67 // pred_check_branch
          %1012 = sbr.rel (%p1010) target = $region72
        $region71: #{tpu_custom_call.1} parent=67 // pred_region
          %s1013 = sand.u32 %s248, 1
          %s1014 = scalar_lea.sflag [#allocation3], %s1013
          %s1015 = sand.u32 %s248, 1
          %s1016 = smul.addr %s1015, 16
          %s1017 = scalar_lea.vmem [#allocation2], %s1016
          %1018 = dma.done %s1014, 256
        $region72: #{tpu_custom_call.1} parent=67 // pred_fallthru
          _
      $region68: #{tpu_custom_call.1} parent=5 // pred_fallthru
        _
    $region6: #{tpu_custom_call.1} parent=1 // loop_footer
      %s23 = sadd.s32 1, %s19
    $region7: #{tpu_custom_call.1} parent=1 // loop_footer_branch
      %18 = sbr.rel target = $region3
    $region8: #{tpu_custom_call.1} parent=1 // loop_exit
      _
    %1019 = vsyncpa [#allocation3], 1
    %s1020 = scalar_lea.sflag [#allocation3], 1
    %1021 = vsyncpa %s1020, 1

</llo_original>
